<compile_context>
chip_gen: v7x
topology: tpu7x:2x2x1
jax: 0.10.0
libtpu: 0.0.40
codegen_flags: <defaults>
</compile_context>

<pallas_src>
import functools

import jax
import jax.numpy as jnp
from jax.experimental import pallas as pl
from jax.experimental.pallas import tpu as pltpu


def _round_up(x, m):
    return (x + m - 1) // m * m


def _vmem_capacity_bytes():
    """Per-core VMEM capacity; conservative (v7x) fallback if unqueryable."""
    try:
        info = pltpu.get_tpu_info()
        cap = getattr(info, "vmem_capacity_bytes", None)
        if cap:
            return int(cap)
    except Exception:
        pass
    return 64 << 20


def _pick_tile_and_vmem(n, d_pad, gram_itemsize):
    """Pick the row/col tile T and a vmem_limit_bytes for the pallas_call.

    Budget model per grid step: double-buffered row + column feature tiles
    (T x d_pad each) plus a few (T, T) f32 temporaries (Gram / masks / selects)
    and small (T, 1) vectors.  Larger T cuts the O(N^2 * D / T) column
    re-streaming, so take the biggest T that fits ~half of physical VMEM.
    """
    cap = _vmem_capacity_bytes()
    budget = cap // 2

    def need(t):
        return 4 * t * d_pad * gram_itemsize + 4 * t * t * 4 + 16 * t * 4

    tile = 128
    for cand in (512, 256, 128):
        if need(cand) <= budget:
            tile = cand
            break

    # Keep >= 2 row tiles whenever the batch allows it: the row axis is the
    # only "parallel" grid axis, so a single row tile would idle one of v7x's
    # two TensorCores (negligible cost on single-TC v5e/v6e).
    while tile > 128 and _round_up(max(n, 1), tile) // tile < 2:
        tile //= 2

    vmem_limit = min(int(cap * 0.9), max(32 << 20, 2 * need(tile)))
    return tile, vmem_limit


def _triplet_kernel(xr_ref, xc_ref, sqr_ref, sqch_ref, labr_ref, labc_ref,
                    o_ref, spos_ref, sneg_ref, *, margin, n_valid, block_n):
    """Grid = (row_tiles, col_tiles); the column axis is the sequential
    reduction ('arbitrary'), the row axis is 'parallel'."""
    # Read grid coordinates OUTSIDE any pl.when body (interpret-mode safe).
    i = pl.program_id(0)
    j = pl.program_id(1)
    nj = pl.num_programs(1)

    @pl.when(j == 0)
    def _init():
        spos_ref[...] = jnp.full_like(spos_ref, jnp.inf)    # running min over positives
        sneg_ref[...] = jnp.full_like(sneg_ref, -jnp.inf)   # running max over negatives

    # s[i, j] = <x_i, x_j> - 0.5 * ||x_j||^2   (so dist^2 = ||x_i||^2 - 2*s).
    gram = jax.lax.dot_general(
        xr_ref[...], xc_ref[...], (((1,), (1,)), ((), ())),
        preferred_element_type=jnp.float32)                 # (T, T) on the MXU
    s = gram - sqch_ref[...]                                # lane-broadcast sub

    same = labr_ref[...] == labc_ref[...]                   # (T, T) bool
    col = j * block_n + jax.lax.broadcasted_iota(jnp.int32, (1, block_n), 1)
    col_invalid = col >= n_valid                            # (1, T): N -> n_pad padding

    # Positives: pad labels are -1 and never equal a valid class index (>= 0),
    # so no column-validity mask is needed.  (Padded rows are zeroed at the end.)
    spos_ref[...] = jnp.minimum(
        spos_ref[...],
        jnp.min(jnp.where(same, s, jnp.inf), axis=1, keepdims=True))
    # Negatives: exclude same-class and padded columns in a single select.
    sneg_ref[...] = jnp.maximum(
        sneg_ref[...],
        jnp.max(jnp.where(jnp.logical_or(same, col_invalid), -jnp.inf, s),
                axis=1, keepdims=True))

    @pl.when(j == nj - 1)
    def _finalize():
        sqr = sqr_ref[...]                                  # (T, 1) f32 row norms
        # clamp commutes with max/min (monotone), so clamping the two (T, 1)
        # reductions matches the reference's elementwise clamp-then-sqrt.
        ap = jnp.sqrt(jnp.maximum(sqr - 2.0 * spos_ref[...], 1e-12))
        an = jnp.sqrt(jnp.maximum(sqr - 2.0 * sneg_ref[...], 1e-12))
        row = i * block_n + jax.lax.broadcasted_iota(jnp.int32, (block_n, 1), 0)
        row_valid = (row < n_valid).astype(jnp.float32)     # zero padded rows
        o_ref[...] = jnp.maximum(ap - an + margin, 0.0) * row_valid


def triplet_loss(inputs, targets, margin=0.3, gram_dtype=jnp.float32):
    """inputs: (N, D) float features; targets: (N,) int class labels (>= 0).

    Preconditions (same as the PyTorch module): every anchor has at least one
    same-class and one different-class sample; labels are class indices >= 0
    (the internal padding sentinel is -1).

    gram_dtype: dtype of the Gram-matmul operands.  jnp.bfloat16 gives ~3x MXU
    throughput and half the column DMA bytes on v6e/v7x at ~1e-3 relative
    error on dist^2 (can flip near-tied hard mining); default f32 is exact.
    """
    n, d = inputs.shape
    d_pad = _round_up(d, 128)                               # lane-align the contraction
    tile, vmem_limit = _pick_tile_and_vmem(n, d_pad, jnp.dtype(gram_dtype).itemsize)
    n_pad = _round_up(n, tile)

    x = jnp.asarray(inputs, jnp.float32)
    x = jnp.pad(x, ((0, n_pad - n), (0, d_pad - d)))
    sq = jnp.sum(x * x, axis=1)                             # squared norms (f32), once
    sq_row = sq.reshape(n_pad, 1)
    sq_col_half = (0.5 * sq).reshape(1, n_pad)              # pre-halved (free (1,N) op)
    xg = x.astype(gram_dtype)                               # Gram operand (f32 or bf16)

    lab = jnp.pad(jnp.asarray(targets, jnp.int32), (0, n_pad - n),
                  constant_values=-1)
    lab_row = lab.reshape(n_pad, 1)
    lab_col = lab.reshape(1, n_pad)

    n_tiles = n_pad // tile
    kernel = functools.partial(_triplet_kernel, margin=float(margin),
                               n_valid=n, block_n=tile)

    per_row = pl.pallas_call(
        kernel,
        out_shape=jax.ShapeDtypeStruct((n_pad, 1), jnp.float32),
        grid_spec=pltpu.PrefetchScalarGridSpec(
            num_scalar_prefetch=0,
            grid=(n_tiles, n_tiles),
            in_specs=[
                pl.BlockSpec((tile, d_pad), lambda i, j: (i, 0)),   # x row tile
                pl.BlockSpec((tile, d_pad), lambda i, j: (j, 0)),   # x col tile (streamed)
                pl.BlockSpec((tile, 1), lambda i, j: (i, 0)),       # ||x||^2 rows
                pl.BlockSpec((1, tile), lambda i, j: (0, j)),       # 0.5*||x||^2 cols
                pl.BlockSpec((tile, 1), lambda i, j: (i, 0)),       # labels rows
                pl.BlockSpec((1, tile), lambda i, j: (0, j)),       # labels cols
            ],
            out_specs=pl.BlockSpec((tile, 1), lambda i, j: (i, 0)),
            scratch_shapes=[
                pltpu.VMEM((tile, 1), jnp.float32),   # running min_{pos} s
                pltpu.VMEM((tile, 1), jnp.float32),   # running max_{neg} s
            ],
        ),
        compiler_params=pltpu.CompilerParams(
            dimension_semantics=("parallel", "arbitrary"),
            vmem_limit_bytes=vmem_limit,
        ),
    )(xg, xg, sq_row, sq_col_half, lab_row, lab_col)

    # per_row holds relu(ap - an + margin) per anchor (0 for padded rows).
    return jnp.sum(per_row) / n


def _reference_loss(x, t, margin=0.3):
    """Pure-JAX reference mirroring the PyTorch forward."""
    n = x.shape[0]
    sq = jnp.sum(x * x, axis=1, keepdims=True)
    dist = jnp.sqrt(jnp.clip(sq + sq.T - 2.0 * x @ x.T, 1e-12))
    same = t[:, None] == t[None, :]
    eye = jnp.eye(n, dtype=bool)
    dist_ap = jnp.max(jnp.where(same & ~eye, dist, -jnp.inf), axis=1)
    dist_an = jnp.min(jnp.where(~same, dist, jnp.inf), axis=1)
    return jnp.mean(jnp.maximum(dist_ap - dist_an + margin, 0.0))


if __name__ == "__main__":
    key = jax.random.PRNGKey(0)
    n, d = 8, 32
    inputs = jax.random.normal(key, (n, d), dtype=jnp.float32)
    # Every sample has at least one positive (the PyTorch code errors otherwise).
    targets = jnp.array([0, 0, 1, 1, 2, 2, 3, 3], dtype=jnp.int32)

    # Exact (f32 Gram) path: must match the reference tightly.
    loss = jax.block_until_ready(triplet_loss(inputs, targets, margin=0.3))
    ref = jax.block_until_ready(_reference_loss(inputs, targets, margin=0.3))
    assert jnp.allclose(loss, ref, atol=1e-4, rtol=1e-4), (loss, ref)

    # bf16-Gram fast path (v6e/v7x MXU lever): looser tolerance by construction.
    loss_bf16 = jax.block_until_ready(
        triplet_loss(inputs, targets, margin=0.3, gram_dtype=jnp.bfloat16))
    assert jnp.allclose(loss_bf16, ref, atol=5e-2, rtol=5e-2), (loss_bf16, ref)

    print("KERNEL_OK")
</pallas_src>

<mosaic_0001>
module attributes {stable_mosaic.version = 11 : i64} {
  func.func @_triplet_kernel(%arg0: i32, %arg1: i32, %arg2: memref<128x128xf32, #tpu.memory_space<vmem>>, %arg3: memref<128x128xf32, #tpu.memory_space<vmem>>, %arg4: memref<128x1xf32, #tpu.memory_space<vmem>>, %arg5: memref<1x128xf32, #tpu.memory_space<vmem>>, %arg6: memref<128x1xi32, #tpu.memory_space<vmem>>, %arg7: memref<1x128xi32, #tpu.memory_space<vmem>>, %arg8: memref<128x1xf32, #tpu.memory_space<vmem>>, %arg9: memref<128x1xf32, #tpu.memory_space<vmem>>, %arg10: memref<128x1xf32, #tpu.memory_space<vmem>>) attributes {dimension_semantics = [#tpu.dimension_semantics<parallel>, #tpu.dimension_semantics<arbitrary>], iteration_bounds = array<i64: 1, 1>, scalar_prefetch = 0 : i64, scratch_operands = 2 : i64, tpu.core_type = #tpu.core_type<tc>, window_params = [{transform_indices = @transform_0, window_bounds = array<i64: 128, 128>}, {transform_indices = @transform_1, window_bounds = array<i64: 128, 128>}, {transform_indices = @transform_2, window_bounds = array<i64: 128, 1>}, {transform_indices = @transform_3, window_bounds = array<i64: 1, 128>}, {transform_indices = @transform_4, window_bounds = array<i64: 128, 1>}, {transform_indices = @transform_5, window_bounds = array<i64: 1, 128>}, {transform_indices = @transform_6, window_bounds = array<i64: 128, 1>}]} {
    %c0_i32 = arith.constant 0 : i32
    %0 = arith.cmpi eq, %arg1, %c0_i32 : i32
    %1 = arith.extui %0 : i1 to i32
    %c0_i32_0 = arith.constant 0 : i32
    %2 = arith.cmpi ne, %1, %c0_i32_0 : i32
    scf.if %2 {
      %cst_24 = arith.constant 0x7F800000 : f32
      %39 = vector.broadcast %cst_24 : f32 to vector<128x1xf32>
      %c0_25 = arith.constant 0 : index
      %c0_26 = arith.constant 0 : index
      %40 = vector.load %arg9[%c0_25, %c0_26] : memref<128x1xf32, #tpu.memory_space<vmem>>, vector<128x1xf32>
      tpu.vector_store %arg9[%c0_25, %c0_26], %39 {strides = array<i32>} : memref<128x1xf32, #tpu.memory_space<vmem>>, vector<128x1xf32>,
      %cst_27 = arith.constant 0xFF800000 : f32
      %41 = vector.broadcast %cst_27 : f32 to vector<128x1xf32>
      %c0_28 = arith.constant 0 : index
      %c0_29 = arith.constant 0 : index
      %42 = vector.load %arg10[%c0_28, %c0_29] : memref<128x1xf32, #tpu.memory_space<vmem>>, vector<128x1xf32>
      tpu.vector_store %arg10[%c0_28, %c0_29], %41 {strides = array<i32>} : memref<128x1xf32, #tpu.memory_space<vmem>>, vector<128x1xf32>,
    } else {
    }
    %c0 = arith.constant 0 : index
    %c0_1 = arith.constant 0 : index
    %3 = vector.load %arg2[%c0, %c0_1] : memref<128x128xf32, #tpu.memory_space<vmem>>, vector<128x128xf32>
    %c0_2 = arith.constant 0 : index
    %c0_3 = arith.constant 0 : index
    %4 = vector.load %arg3[%c0_2, %c0_3] : memref<128x128xf32, #tpu.memory_space<vmem>>, vector<128x128xf32>
    %cst = arith.constant dense<0.000000e+00> : vector<128x128xf32>
    %5 = tpu.matmul %3, %4, %cst {dimension_numbers = #tpu.dot_dimension_numbers<[1], [1], [0], [0], [0, 0, 1, 0], [], []>} : vector<128x128xf32>, vector<128x128xf32>, vector<128x128xf32> -> vector<128x128xf32>
    %c0_4 = arith.constant 0 : index
    %c0_5 = arith.constant 0 : index
    %6 = vector.load %arg5[%c0_4, %c0_5] : memref<1x128xf32, #tpu.memory_space<vmem>>, vector<1x128xf32>
    %7 = vector.broadcast %6 : vector<1x128xf32> to vector<128x128xf32>
    %8 = arith.subf %5, %7 : vector<128x128xf32>
    %c0_6 = arith.constant 0 : index
    %c0_7 = arith.constant 0 : index
    %9 = vector.load %arg6[%c0_6, %c0_7] : memref<128x1xi32, #tpu.memory_space<vmem>>, vector<128x1xi32>
    %c0_8 = arith.constant 0 : index
    %c0_9 = arith.constant 0 : index
    %10 = vector.load %arg7[%c0_8, %c0_9] : memref<1x128xi32, #tpu.memory_space<vmem>>, vector<1x128xi32>
    %11 = vector.broadcast %9 : vector<128x1xi32> to vector<128x128xi32>
    %12 = vector.broadcast %10 : vector<1x128xi32> to vector<128x128xi32>
    %13 = arith.cmpi eq, %11, %12 : vector<128x128xi32>
    %c128_i32 = arith.constant 128 : i32
    %14 = arith.muli %arg1, %c128_i32 : i32
    %15 = tpu.iota {dimensions = array<i32: 1>} : vector<1x128xi32>
    %16 = vector.broadcast %14 : i32 to vector<1x128xi32>
    %17 = arith.addi %16, %15 : vector<1x128xi32>
    %c8_i32 = arith.constant 8 : i32
    %18 = vector.broadcast %c8_i32 : i32 to vector<1x128xi32>
    %19 = arith.cmpi sge, %17, %18 : vector<1x128xi32>
    %c0_10 = arith.constant 0 : index
    %c0_11 = arith.constant 0 : index
    %20 = vector.load %arg9[%c0_10, %c0_11] : memref<128x1xf32, #tpu.memory_space<vmem>>, vector<128x1xf32>
    %cst_12 = arith.constant 0x7F800000 : f32
    %21 = vector.broadcast %cst_12 : f32 to vector<128x128xf32>
    %22 = arith.select %13, %8, %21 : vector<128x128xi1>, vector<128x128xf32>
    %cst_13 = arith.constant dense<0x7F800000> : vector<128xf32>
    %23 = vector.multi_reduction <minimumf>, %22, %cst_13 [1] : vector<128x128xf32> to vector<128xf32>
    %24 = vector.shape_cast %23 : vector<128xf32> to vector<128x1xf32>
    %25 = arith.minimumf %20, %24 : vector<128x1xf32>
    %c0_14 = arith.constant 0 : index
    %c0_15 = arith.constant 0 : index
    %26 = vector.load %arg9[%c0_14, %c0_15] : memref<128x1xf32, #tpu.memory_space<vmem>>, vector<128x1xf32>
    tpu.vector_store %arg9[%c0_14, %c0_15], %25 {strides = array<i32>} : memref<128x1xf32, #tpu.memory_space<vmem>>, vector<128x1xf32>,
    %c0_16 = arith.constant 0 : index
    %c0_17 = arith.constant 0 : index
    %27 = vector.load %arg10[%c0_16, %c0_17] : memref<128x1xf32, #tpu.memory_space<vmem>>, vector<128x1xf32>
    %28 = vector.broadcast %19 : vector<1x128xi1> to vector<128x128xi1>
    %29 = arith.ori %13, %28 : vector<128x128xi1>
    %cst_18 = arith.constant 0xFF800000 : f32
    %30 = vector.broadcast %cst_18 : f32 to vector<128x128xf32>
    %31 = arith.select %29, %30, %8 : vector<128x128xi1>, vector<128x128xf32>
    %cst_19 = arith.constant dense<0xFF800000> : vector<128xf32>
    %32 = vector.multi_reduction <maximumf>, %31, %cst_19 [1] : vector<128x128xf32> to vector<128xf32>
    %33 = vector.shape_cast %32 : vector<128xf32> to vector<128x1xf32>
    %34 = arith.maximumf %27, %33 : vector<128x1xf32>
    %c0_20 = arith.constant 0 : index
    %c0_21 = arith.constant 0 : index
    %35 = vector.load %arg10[%c0_20, %c0_21] : memref<128x1xf32, #tpu.memory_space<vmem>>, vector<128x1xf32>
    tpu.vector_store %arg10[%c0_20, %c0_21], %34 {strides = array<i32>} : memref<128x1xf32, #tpu.memory_space<vmem>>, vector<128x1xf32>,
    %c0_i32_22 = arith.constant 0 : i32
    %36 = arith.cmpi eq, %arg1, %c0_i32_22 : i32
    %37 = arith.extui %36 : i1 to i32
    %c0_i32_23 = arith.constant 0 : i32
    %38 = arith.cmpi ne, %37, %c0_i32_23 : i32
    scf.if %38 {
      %c0_24 = arith.constant 0 : index
      %c0_25 = arith.constant 0 : index
      %39 = vector.load %arg4[%c0_24, %c0_25] : memref<128x1xf32, #tpu.memory_space<vmem>>, vector<128x1xf32>
      %c0_26 = arith.constant 0 : index
      %c0_27 = arith.constant 0 : index
      %40 = vector.load %arg9[%c0_26, %c0_27] : memref<128x1xf32, #tpu.memory_space<vmem>>, vector<128x1xf32>
      %cst_28 = arith.constant 2.000000e+00 : f32
      %41 = vector.broadcast %cst_28 : f32 to vector<128x1xf32>
      %42 = arith.mulf %41, %40 : vector<128x1xf32>
      %43 = arith.subf %39, %42 : vector<128x1xf32>
      %cst_29 = arith.constant 9.99999996E-13 : f32
      %44 = vector.broadcast %cst_29 : f32 to vector<128x1xf32>
      %45 = arith.maximumf %43, %44 : vector<128x1xf32>
      %46 = math.sqrt %45 : vector<128x1xf32>
      %c0_30 = arith.constant 0 : index
      %c0_31 = arith.constant 0 : index
      %47 = vector.load %arg10[%c0_30, %c0_31] : memref<128x1xf32, #tpu.memory_space<vmem>>, vector<128x1xf32>
      %cst_32 = arith.constant 2.000000e+00 : f32
      %48 = vector.broadcast %cst_32 : f32 to vector<128x1xf32>
      %49 = arith.mulf %48, %47 : vector<128x1xf32>
      %50 = arith.subf %39, %49 : vector<128x1xf32>
      %cst_33 = arith.constant 9.99999996E-13 : f32
      %51 = vector.broadcast %cst_33 : f32 to vector<128x1xf32>
      %52 = arith.maximumf %50, %51 : vector<128x1xf32>
      %53 = math.sqrt %52 : vector<128x1xf32>
      %c128_i32_34 = arith.constant 128 : i32
      %54 = arith.muli %arg0, %c128_i32_34 : i32
      %55 = tpu.iota {dimensions = array<i32: 0>} : vector<128x1xi32>
      %56 = vector.broadcast %54 : i32 to vector<128x1xi32>
      %57 = arith.addi %56, %55 : vector<128x1xi32>
      %c8_i32_35 = arith.constant 8 : i32
      %58 = vector.broadcast %c8_i32_35 : i32 to vector<128x1xi32>
      %59 = arith.cmpi slt, %57, %58 : vector<128x1xi32>
      %60 = arith.extui %59 : vector<128x1xi1> to vector<128x1xi32>
      %61 = arith.sitofp %60 : vector<128x1xi32> to vector<128x1xf32>
      %62 = arith.subf %46, %53 : vector<128x1xf32>
      %cst_36 = arith.constant 3.000000e-01 : f32
      %63 = vector.broadcast %cst_36 : f32 to vector<128x1xf32>
      %64 = arith.addf %62, %63 : vector<128x1xf32>
      %cst_37 = arith.constant 0.000000e+00 : f32
      %65 = vector.broadcast %cst_37 : f32 to vector<128x1xf32>
      %66 = arith.maximumf %64, %65 : vector<128x1xf32>
      %67 = arith.mulf %66, %61 : vector<128x1xf32>
      %c0_38 = arith.constant 0 : index
      %c0_39 = arith.constant 0 : index
      %68 = vector.load %arg8[%c0_38, %c0_39] : memref<128x1xf32, #tpu.memory_space<vmem>>, vector<128x1xf32>
      tpu.vector_store %arg8[%c0_38, %c0_39], %67 {strides = array<i32>} : memref<128x1xf32, #tpu.memory_space<vmem>>, vector<128x1xf32>,
    } else {
    }
    return
  }
  func.func @transform_0(%arg0: i32, %arg1: i32) -> (i32, i32) {
    %c0_i32 = arith.constant 0 : i32
    %c0_i32_0 = arith.constant 0 : i32
    return %arg0, %c0_i32 : i32, i32
  }
  func.func @transform_1(%arg0: i32, %arg1: i32) -> (i32, i32) {
    %c0_i32 = arith.constant 0 : i32
    %c0_i32_0 = arith.constant 0 : i32
    return %arg1, %c0_i32 : i32, i32
  }
  func.func @transform_2(%arg0: i32, %arg1: i32) -> (i32, i32) {
    %c0_i32 = arith.constant 0 : i32
    %c0_i32_0 = arith.constant 0 : i32
    return %arg0, %c0_i32 : i32, i32
  }
  func.func @transform_3(%arg0: i32, %arg1: i32) -> (i32, i32) {
    %c0_i32 = arith.constant 0 : i32
    %c0_i32_0 = arith.constant 0 : i32
    return %c0_i32, %arg1 : i32, i32
  }
  func.func @transform_4(%arg0: i32, %arg1: i32) -> (i32, i32) {
    %c0_i32 = arith.constant 0 : i32
    %c0_i32_0 = arith.constant 0 : i32
    return %arg0, %c0_i32 : i32, i32
  }
  func.func @transform_5(%arg0: i32, %arg1: i32) -> (i32, i32) {
    %c0_i32 = arith.constant 0 : i32
    %c0_i32_0 = arith.constant 0 : i32
    return %c0_i32, %arg1 : i32, i32
  }
  func.func @transform_6(%arg0: i32, %arg1: i32) -> (i32, i32) {
    %c0_i32 = arith.constant 0 : i32
    %c0_i32_0 = arith.constant 0 : i32
    return %arg0, %c0_i32 : i32, i32
  }
}

</mosaic_0001>

<llo_original>
// kernel: tpu_custom_call.1
$region0: #{tpu_custom_call.1}
  #allocation0 [shape = 'u32[]', space=smem, size = 0x4, offset = 0x4, fixed_abs, tag = 'smem constant byte address 0x4 - core index']
  #allocation1 [shape = 'u32[144,128]{1,0:T(1,128)}', space=vmem, size = 0x12000, scoped, tag = 'internal scratch']
  #allocation2 [shape = 'f32[128,1]{1,0:T(8,128)}', space=vmem, size = 0x10000, scoped, tag = 'scratch operand']
  #allocation3 [shape = 'f32[128,1]{1,0:T(8,128)}', space=vmem, size = 0x10000, scoped, tag = 'scratch operand']
  %s0 = inlined_call_operand.vmem [shape: f32[128,128], index: 0, kind: input, shape index: {}]
  %s1 = inlined_call_operand.vmem [shape: f32[128,128], index: 1, kind: input, shape index: {}]
  %s2 = inlined_call_operand.vmem [shape: f32[128,1], index: 2, kind: input, shape index: {}]
  %s3 = inlined_call_operand.vmem [shape: f32[1,128], index: 3, kind: input, shape index: {}]
  %s4 = inlined_call_operand.vmem [shape: s32[128,1], index: 4, kind: input, shape index: {}]
  %s5 = inlined_call_operand.vmem [shape: s32[1,128], index: 5, kind: input, shape index: {}]
  %s6 = inlined_call_operand.vmem [shape: f32[128,1], index: 6, kind: output, shape index: {}]
  %s7 = sld [smem:[#allocation0]]
  $region42: #{tpu_custom_call.1} parent=0
    _
  %s9 = ssub.s32 1, %s7
  %s10 = scalar_select 0, %s9, %s7
  // Predicated region
  $region2: #{tpu_custom_call.1} parent=0 // pred_check
    _
  $region3: #{tpu_custom_call.1} parent=0 // pred_check_branch
    %12 = sbr.rel (0) target = $region5
  $region4: #{tpu_custom_call.1} parent=0 // pred_region
    _
  $region5: #{tpu_custom_call.1} parent=0 // pred_fallthru
    _
  // Predicated region
  $region6: #{tpu_custom_call.1} parent=0 // pred_check
    _
  $region7: #{tpu_custom_call.1} parent=0 // pred_check_branch
    %14 = sbr.rel (0) target = $region9
  $region8: #{tpu_custom_call.1} parent=0 // pred_region
    _
  $region9: #{tpu_custom_call.1} parent=0 // pred_fallthru
    _
  // Predicated region
  $region10: #{tpu_custom_call.1} parent=0 // pred_check
    _
  $region11: #{tpu_custom_call.1} parent=0 // pred_check_branch
    %16 = sbr.rel (0) target = $region13
  $region12: #{tpu_custom_call.1} parent=0 // pred_region
    _
  $region13: #{tpu_custom_call.1} parent=0 // pred_fallthru
    _
  // Predicated region
  $region14: #{tpu_custom_call.1} parent=0 // pred_check
    _
  $region15: #{tpu_custom_call.1} parent=0 // pred_check_branch
    %18 = sbr.rel (0) target = $region17
  $region16: #{tpu_custom_call.1} parent=0 // pred_region
    _
  $region17: #{tpu_custom_call.1} parent=0 // pred_fallthru
    _
  // Predicated region
  $region18: #{tpu_custom_call.1} parent=0 // pred_check
    _
  $region19: #{tpu_custom_call.1} parent=0 // pred_check_branch
    %20 = sbr.rel (0) target = $region21
  $region20: #{tpu_custom_call.1} parent=0 // pred_region
    _
  $region21: #{tpu_custom_call.1} parent=0 // pred_fallthru
    _
  // Predicated region
  $region22: #{tpu_custom_call.1} parent=0 // pred_check
    _
  $region23: #{tpu_custom_call.1} parent=0 // pred_check_branch
    %22 = sbr.rel (0) target = $region25
  $region24: #{tpu_custom_call.1} parent=0 // pred_region
    _
  $region25: #{tpu_custom_call.1} parent=0 // pred_fallthru
    _
  %p23 = scmp.eq.s32.totalorder 0, 0
  // Predicated region
  $region26: #{tpu_custom_call.1} parent=0 // pred_check
    %p24 = pneg %p23
  $region27: #{tpu_custom_call.1} parent=0 // pred_check_branch
    %26 = sbr.rel (%p24) target = $region29
  $region28: #{tpu_custom_call.1} parent=0 // pred_region
    %vm27 = vcmask 7168
    %28 = vst.msk [vmem:[#allocation2] sm:$0xff] %vm27, inf
    %29 = vst.msk [vmem:[#allocation2 + $0x8] sm:$0xff] %vm27, inf
    %30 = vst.msk [vmem:[#allocation2 + $0x10] sm:$0xff] %vm27, inf
    %31 = vst.msk [vmem:[#allocation2 + $0x18] sm:$0xff] %vm27, inf
    %32 = vst.msk [vmem:[#allocation2 + $0x20] sm:$0xff] %vm27, inf
    %33 = vst.msk [vmem:[#allocation2 + $0x28] sm:$0xff] %vm27, inf
    %34 = vst.msk [vmem:[#allocation2 + $0x30] sm:$0xff] %vm27, inf
    %35 = vst.msk [vmem:[#allocation2 + $0x38] sm:$0xff] %vm27, inf
    %36 = vst.msk [vmem:[#allocation2 + $0x40] sm:$0xff] %vm27, inf
    %37 = vst.msk [vmem:[#allocation2 + $0x48] sm:$0xff] %vm27, inf
    %38 = vst.msk [vmem:[#allocation2 + $0x50] sm:$0xff] %vm27, inf
    %39 = vst.msk [vmem:[#allocation2 + $0x58] sm:$0xff] %vm27, inf
    %40 = vst.msk [vmem:[#allocation2 + $0x60] sm:$0xff] %vm27, inf
    %41 = vst.msk [vmem:[#allocation2 + $0x68] sm:$0xff] %vm27, inf
    %42 = vst.msk [vmem:[#allocation2 + $0x70] sm:$0xff] %vm27, inf
    %43 = vst.msk [vmem:[#allocation2 + $0x78] sm:$0xff] %vm27, inf
    %44 = vst.msk [vmem:[#allocation3] sm:$0xff] %vm27, -inf
    %45 = vst.msk [vmem:[#allocation3 + $0x8] sm:$0xff] %vm27, -inf
    %46 = vst.msk [vmem:[#allocation3 + $0x10] sm:$0xff] %vm27, -inf
    %47 = vst.msk [vmem:[#allocation3 + $0x18] sm:$0xff] %vm27, -inf
    %48 = vst.msk [vmem:[#allocation3 + $0x20] sm:$0xff] %vm27, -inf
    %49 = vst.msk [vmem:[#allocation3 + $0x28] sm:$0xff] %vm27, -inf
    %50 = vst.msk [vmem:[#allocation3 + $0x30] sm:$0xff] %vm27, -inf
    %51 = vst.msk [vmem:[#allocation3 + $0x38] sm:$0xff] %vm27, -inf
    %52 = vst.msk [vmem:[#allocation3 + $0x40] sm:$0xff] %vm27, -inf
    %53 = vst.msk [vmem:[#allocation3 + $0x48] sm:$0xff] %vm27, -inf
    %54 = vst.msk [vmem:[#allocation3 + $0x50] sm:$0xff] %vm27, -inf
    %55 = vst.msk [vmem:[#allocation3 + $0x58] sm:$0xff] %vm27, -inf
    %56 = vst.msk [vmem:[#allocation3 + $0x60] sm:$0xff] %vm27, -inf
    %57 = vst.msk [vmem:[#allocation3 + $0x68] sm:$0xff] %vm27, -inf
    %58 = vst.msk [vmem:[#allocation3 + $0x70] sm:$0xff] %vm27, -inf
    %59 = vst.msk [vmem:[#allocation3 + $0x78] sm:$0xff] %vm27, -inf
  $region29: #{tpu_custom_call.1} parent=0 // pred_fallthru
    _
  %v60 = vld [vmem:[%s0] sm:$0xff]
  %v61 = vld [vmem:[%s0 + $0x8] sm:$0xff]
  %v62 = vld [vmem:[%s0 + $0x10] sm:$0xff]
  %v63 = vld [vmem:[%s0 + $0x18] sm:$0xff]
  %v64 = vld [vmem:[%s0 + $0x20] sm:$0xff]
  %v65 = vld [vmem:[%s0 + $0x28] sm:$0xff]
  %v66 = vld [vmem:[%s0 + $0x30] sm:$0xff]
  %v67 = vld [vmem:[%s0 + $0x38] sm:$0xff]
  %v68 = vld [vmem:[%s0 + $0x40] sm:$0xff]
  %v69 = vld [vmem:[%s0 + $0x48] sm:$0xff]
  %v70 = vld [vmem:[%s0 + $0x50] sm:$0xff]
  %v71 = vld [vmem:[%s0 + $0x58] sm:$0xff]
  %v72 = vld [vmem:[%s0 + $0x60] sm:$0xff]
  %v73 = vld [vmem:[%s0 + $0x68] sm:$0xff]
  %v74 = vld [vmem:[%s0 + $0x70] sm:$0xff]
  %v75 = vld [vmem:[%s0 + $0x78] sm:$0xff]
  %v76 = vld [vmem:[%s1] sm:$0xff]
  %v77 = vld [vmem:[%s1 + $0x8] sm:$0xff]
  %v78 = vld [vmem:[%s1 + $0x10] sm:$0xff]
  %v79 = vld [vmem:[%s1 + $0x18] sm:$0xff]
  %v80 = vld [vmem:[%s1 + $0x20] sm:$0xff]
  %v81 = vld [vmem:[%s1 + $0x28] sm:$0xff]
  %v82 = vld [vmem:[%s1 + $0x30] sm:$0xff]
  %v83 = vld [vmem:[%s1 + $0x38] sm:$0xff]
  %v84 = vld [vmem:[%s1 + $0x40] sm:$0xff]
  %v85 = vld [vmem:[%s1 + $0x48] sm:$0xff]
  %v86 = vld [vmem:[%s1 + $0x50] sm:$0xff]
  %v87 = vld [vmem:[%s1 + $0x58] sm:$0xff]
  %v88 = vld [vmem:[%s1 + $0x60] sm:$0xff]
  %v89 = vld [vmem:[%s1 + $0x68] sm:$0xff]
  %v90 = vld [vmem:[%s1 + $0x70] sm:$0xff]
  %v91 = vld [vmem:[%s1 + $0x78] sm:$0xff]
  %92 = vmatprep.subr.mxu0 0.0
  %93 = vmatpush1.xpose.msra.mxu0 %v76
  %94 = vmatprep.subr.mxu0 0.0
  %95 = vmatpush1.xpose.msra.mxu0 %v77
  %96 = vmatprep.subr.mxu0 0.0
  %97 = vmatpush1.xpose.msra.mxu0 %v78
  %98 = vmatprep.subr.mxu0 0.0
  %99 = vmatpush1.xpose.msra.mxu0 %v79
  %100 = vmatprep.subr.mxu0 0.0
  %101 = vmatpush1.xpose.msra.mxu0 %v80
  %102 = vmatprep.subr.mxu0 0.0
  %103 = vmatpush1.xpose.msra.mxu0 %v81
  %104 = vmatprep.subr.mxu0 0.0
  %105 = vmatpush1.xpose.msra.mxu0 %v82
  %106 = vmatprep.subr.mxu0 0.0
  %107 = vmatpush1.xpose.msra.mxu0 %v83
  %108 = vmatprep.subr.mxu0 0.0
  %109 = vmatpush1.xpose.msra.mxu0 %v84
  %110 = vmatprep.subr.mxu0 0.0
  %111 = vmatpush1.xpose.msra.mxu0 %v85
  %112 = vmatprep.subr.mxu0 0.0
  %113 = vmatpush1.xpose.msra.mxu0 %v86
  %114 = vmatprep.subr.mxu0 0.0
  %115 = vmatpush1.xpose.msra.mxu0 %v87
  %116 = vmatprep.subr.mxu0 0.0
  %117 = vmatpush1.xpose.msra.mxu0 %v88
  %118 = vmatprep.subr.mxu0 0.0
  %119 = vmatpush1.xpose.msra.mxu0 %v89
  %120 = vmatprep.subr.mxu0 0.0
  %121 = vmatpush1.xpose.msra.mxu0 %v90
  %122 = vmatprep.subr.mxu0 0.0
  %123 = vmatpush1.xpose.msra.mxu0 %v91
  %124 = vmatprep.subr.mxu0 0.0
  %125 = vmatpush1.xpose.msra.mxu0 0.0
  %126 = vmatprep.subr.mxu0 0.0
  %127 = vmatpush1.xpose.msra.mxu0 0.0
  %128 = vmatprep.subr.mxu0 0.0
  %129 = vmatpush1.xpose.msra.mxu0 0.0
  %130 = vmatprep.subr.mxu0 0.0
  %131 = vmatpush1.xpose.msra.mxu0 0.0
  %132 = vmatprep.subr.mxu0 0.0
  %133 = vmatpush1.xpose.msra.mxu0 0.0
  %134 = vmatprep.subr.mxu0 0.0
  %135 = vmatpush1.xpose.msra.mxu0 0.0
  %136 = vmatprep.subr.mxu0 0.0
  %137 = vmatpush1.xpose.msra.mxu0 0.0
  %138 = vmatprep.subr.mxu0 0.0
  %139 = vmatpush1.xpose.msra.mxu0 0.0
  %140 = vmatprep.subr.mxu0 0.0
  %141 = vmatpush1.xpose.msra.mxu0 0.0
  %142 = vmatprep.subr.mxu0 0.0
  %143 = vmatpush1.xpose.msra.mxu0 0.0
  %144 = vmatprep.subr.mxu0 0.0
  %145 = vmatpush1.xpose.msra.mxu0 0.0
  %146 = vmatprep.subr.mxu0 0.0
  %147 = vmatpush1.xpose.msra.mxu0 0.0
  %148 = vmatprep.subr.mxu0 0.0
  %149 = vmatpush1.xpose.msra.mxu0 0.0
  %150 = vmatprep.subr.mxu0 0.0
  %151 = vmatpush1.xpose.msra.mxu0 0.0
  %152 = vmatprep.subr.mxu0 0.0
  %153 = vmatpush1.xpose.msra.mxu0 0.0
  %154 = vmatprep.subr.mxu0 0.0
  %155 = vmatpush1.xpose.msra.mxu0 0.0
  %156 = vmatprep.mubr.f32.mxu0 0.0
  %157 = vmatmul.mubr.f32.gmra.mrb[0].mxu0 %v60
  %v158 = vpop.f32.mrb[0].mxu0
  %v159 = vadd.f32 0.0, %v158
  %v160 = vpop.f32.mrb[0].mxu0
  %161 = vmatprep.mubr.f32.mxu0 0.0
  %162 = vmatmul.mubr.f32.gmra.mrb[0].mxu0 %v61
  %v163 = vpop.f32.mrb[0].mxu0
  %v164 = vadd.f32 0.0, %v163
  %v165 = vpop.f32.mrb[0].mxu0
  %166 = vmatprep.mubr.f32.mxu0 0.0
  %167 = vmatmul.mubr.f32.gmra.mrb[0].mxu0 %v62
  %v168 = vpop.f32.mrb[0].mxu0
  %v169 = vadd.f32 0.0, %v168
  %v170 = vpop.f32.mrb[0].mxu0
  %171 = vmatprep.mubr.f32.mxu0 0.0
  %172 = vmatmul.mubr.f32.gmra.mrb[0].mxu0 %v63
  %v173 = vpop.f32.mrb[0].mxu0
  %v174 = vadd.f32 0.0, %v173
  %v175 = vpop.f32.mrb[0].mxu0
  %176 = vmatprep.mubr.f32.mxu0 0.0
  %177 = vmatmul.mubr.f32.gmra.mrb[0].mxu0 %v64
  %v178 = vpop.f32.mrb[0].mxu0
  %v179 = vadd.f32 0.0, %v178
  %v180 = vpop.f32.mrb[0].mxu0
  %181 = vmatprep.mubr.f32.mxu0 0.0
  %182 = vmatmul.mubr.f32.gmra.mrb[0].mxu0 %v65
  %v183 = vpop.f32.mrb[0].mxu0
  %v184 = vadd.f32 0.0, %v183
  %v185 = vpop.f32.mrb[0].mxu0
  %186 = vmatprep.mubr.f32.mxu0 0.0
  %187 = vmatmul.mubr.f32.gmra.mrb[0].mxu0 %v66
  %v188 = vpop.f32.mrb[0].mxu0
  %v189 = vadd.f32 0.0, %v188
  %v190 = vpop.f32.mrb[0].mxu0
  %191 = vmatprep.mubr.f32.mxu0 0.0
  %192 = vmatmul.mubr.f32.gmra.mrb[0].mxu0 %v67
  %v193 = vpop.f32.mrb[0].mxu0
  %v194 = vadd.f32 0.0, %v193
  %v195 = vpop.f32.mrb[0].mxu0
  %196 = vmatprep.mubr.f32.mxu0 0.0
  %197 = vmatmul.mubr.f32.gmra.mrb[0].mxu0 %v68
  %v198 = vpop.f32.mrb[0].mxu0
  %v199 = vadd.f32 0.0, %v198
  %v200 = vpop.f32.mrb[0].mxu0
  %201 = vmatprep.mubr.f32.mxu0 0.0
  %202 = vmatmul.mubr.f32.gmra.mrb[0].mxu0 %v69
  %v203 = vpop.f32.mrb[0].mxu0
  %v204 = vadd.f32 0.0, %v203
  %v205 = vpop.f32.mrb[0].mxu0
  %206 = vmatprep.mubr.f32.mxu0 0.0
  %207 = vmatmul.mubr.f32.gmra.mrb[0].mxu0 %v70
  %v208 = vpop.f32.mrb[0].mxu0
  %v209 = vadd.f32 0.0, %v208
  %v210 = vpop.f32.mrb[0].mxu0
  %211 = vmatprep.mubr.f32.mxu0 0.0
  %212 = vmatmul.mubr.f32.gmra.mrb[0].mxu0 %v71
  %v213 = vpop.f32.mrb[0].mxu0
  %v214 = vadd.f32 0.0, %v213
  %v215 = vpop.f32.mrb[0].mxu0
  %216 = vmatprep.mubr.f32.mxu0 0.0
  %217 = vmatmul.mubr.f32.gmra.mrb[0].mxu0 %v72
  %v218 = vpop.f32.mrb[0].mxu0
  %v219 = vadd.f32 0.0, %v218
  %v220 = vpop.f32.mrb[0].mxu0
  %221 = vmatprep.mubr.f32.mxu0 0.0
  %222 = vmatmul.mubr.f32.gmra.mrb[0].mxu0 %v73
  %v223 = vpop.f32.mrb[0].mxu0
  %v224 = vadd.f32 0.0, %v223
  %v225 = vpop.f32.mrb[0].mxu0
  %226 = vmatprep.mubr.f32.mxu0 0.0
  %227 = vmatmul.mubr.f32.gmra.mrb[0].mxu0 %v74
  %v228 = vpop.f32.mrb[0].mxu0
  %v229 = vadd.f32 0.0, %v228
  %v230 = vpop.f32.mrb[0].mxu0
  %231 = vmatprep.mubr.f32.mxu0 0.0
  %232 = vmatmul.mubr.f32.gmra.mrb[0].mxu0 %v75
  %v233 = vpop.f32.mrb[0].mxu0
  %v234 = vadd.f32 0.0, %v233
  %v235 = vpop.f32.mrb[0].mxu0
  %236 = vdwg.mxu0
  %v237 = vld [vmem:[%s3] sm:$0x1]
  %v239 = vlaneseq
  %v240 = vshrl.u32 %v239, 7
  %v241 = vsub.s32 0, %v240
  %v242 = vrot.slane %v237, %v241
  %v244 = vsub.f32 %v159, %v242
  %v245 = vsub.f32 %v164, %v242
  %v246 = vsub.f32 %v169, %v242
  %v247 = vsub.f32 %v174, %v242
  %v248 = vsub.f32 %v179, %v242
  %v249 = vsub.f32 %v184, %v242
  %v250 = vsub.f32 %v189, %v242
  %v251 = vsub.f32 %v194, %v242
  %v252 = vsub.f32 %v199, %v242
  %v253 = vsub.f32 %v204, %v242
  %v254 = vsub.f32 %v209, %v242
  %v255 = vsub.f32 %v214, %v242
  %v256 = vsub.f32 %v219, %v242
  %v257 = vsub.f32 %v224, %v242
  %v258 = vsub.f32 %v229, %v242
  %v259 = vsub.f32 %v234, %v242
  %v260 = vld [vmem:[%s4] sm:$0xff]
  %v261 = vld [vmem:[%s4 + $0x8] sm:$0xff]
  %v262 = vld [vmem:[%s4 + $0x10] sm:$0xff]
  %v263 = vld [vmem:[%s4 + $0x18] sm:$0xff]
  %v264 = vld [vmem:[%s4 + $0x20] sm:$0xff]
  %v265 = vld [vmem:[%s4 + $0x28] sm:$0xff]
  %v266 = vld [vmem:[%s4 + $0x30] sm:$0xff]
  %v267 = vld [vmem:[%s4 + $0x38] sm:$0xff]
  %v268 = vld [vmem:[%s4 + $0x40] sm:$0xff]
  %v269 = vld [vmem:[%s4 + $0x48] sm:$0xff]
  %v270 = vld [vmem:[%s4 + $0x50] sm:$0xff]
  %v271 = vld [vmem:[%s4 + $0x58] sm:$0xff]
  %v272 = vld [vmem:[%s4 + $0x60] sm:$0xff]
  %v273 = vld [vmem:[%s4 + $0x68] sm:$0xff]
  %v274 = vld [vmem:[%s4 + $0x70] sm:$0xff]
  %v275 = vld [vmem:[%s4 + $0x78] sm:$0xff]
  %v276 = vld [vmem:[%s5] sm:$0x1]
  %277 = vset.pattern.permute.xlu0 0
  %278 = vperm.xlu0 %277, %v260
  %v279 = vpop.permute.xlu0 %278
  %280 = vset.pattern.permute.xlu0 0
  %281 = vperm.xlu0 %280, %v261
  %v282 = vpop.permute.xlu0 %281
  %283 = vset.pattern.permute.xlu0 0
  %284 = vperm.xlu0 %283, %v262
  %v285 = vpop.permute.xlu0 %284
  %286 = vset.pattern.permute.xlu0 0
  %287 = vperm.xlu0 %286, %v263
  %v288 = vpop.permute.xlu0 %287
  %289 = vset.pattern.permute.xlu0 0
  %290 = vperm.xlu0 %289, %v264
  %v291 = vpop.permute.xlu0 %290
  %292 = vset.pattern.permute.xlu0 0
  %293 = vperm.xlu0 %292, %v265
  %v294 = vpop.permute.xlu0 %293
  %295 = vset.pattern.permute.xlu0 0
  %296 = vperm.xlu0 %295, %v266
  %v297 = vpop.permute.xlu0 %296
  %298 = vset.pattern.permute.xlu0 0
  %299 = vperm.xlu0 %298, %v267
  %v300 = vpop.permute.xlu0 %299
  %301 = vset.pattern.permute.xlu0 0
  %302 = vperm.xlu0 %301, %v268
  %v303 = vpop.permute.xlu0 %302
  %304 = vset.pattern.permute.xlu0 0
  %305 = vperm.xlu0 %304, %v269
  %v306 = vpop.permute.xlu0 %305
  %307 = vset.pattern.permute.xlu0 0
  %308 = vperm.xlu0 %307, %v270
  %v309 = vpop.permute.xlu0 %308
  %310 = vset.pattern.permute.xlu0 0
  %311 = vperm.xlu0 %310, %v271
  %v312 = vpop.permute.xlu0 %311
  %313 = vset.pattern.permute.xlu0 0
  %314 = vperm.xlu0 %313, %v272
  %v315 = vpop.permute.xlu0 %314
  %316 = vset.pattern.permute.xlu0 0
  %317 = vperm.xlu0 %316, %v273
  %v318 = vpop.permute.xlu0 %317
  %319 = vset.pattern.permute.xlu0 0
  %320 = vperm.xlu0 %319, %v274
  %v321 = vpop.permute.xlu0 %320
  %322 = vset.pattern.permute.xlu0 0
  %323 = vperm.xlu0 %322, %v275
  %v324 = vpop.permute.xlu0 %323
  %v325 = vlaneseq
  %v326 = vshrl.u32 %v325, 7
  %v327 = vsub.s32 0, %v326
  %v328 = vrot.slane %v276, %v327
  %vm329 = vcmp.eq.s32.totalorder %v279, %v328
  %vm330 = vcmp.eq.s32.totalorder %v282, %v328
  %vm331 = vcmp.eq.s32.totalorder %v285, %v328
  %vm332 = vcmp.eq.s32.totalorder %v288, %v328
  %vm333 = vcmp.eq.s32.totalorder %v291, %v328
  %vm334 = vcmp.eq.s32.totalorder %v294, %v328
  %vm335 = vcmp.eq.s32.totalorder %v297, %v328
  %vm336 = vcmp.eq.s32.totalorder %v300, %v328
  %vm337 = vcmp.eq.s32.totalorder %v303, %v328
  %vm338 = vcmp.eq.s32.totalorder %v306, %v328
  %vm339 = vcmp.eq.s32.totalorder %v309, %v328
  %vm340 = vcmp.eq.s32.totalorder %v312, %v328
  %vm341 = vcmp.eq.s32.totalorder %v315, %v328
  %vm342 = vcmp.eq.s32.totalorder %v318, %v328
  %vm343 = vcmp.eq.s32.totalorder %v321, %v328
  %vm344 = vcmp.eq.s32.totalorder %v324, %v328
  %s345 = smul.u32 0, 128
  %v346 = vlaneseq
  %v347 = vand.u32 %v346, 127
  %v348 = vstv %s345
  %v349 = vadd.s32 %v348, %v347
  %vm350 = vcmp.ge.s32.totalorder %v349, 8
  %v351 = vld [vmem:[#allocation2] sm:$0xff]
  %v352 = vld [vmem:[#allocation2 + $0x8] sm:$0xff]
  %v353 = vld [vmem:[#allocation2 + $0x10] sm:$0xff]
  %v354 = vld [vmem:[#allocation2 + $0x18] sm:$0xff]
  %v355 = vld [vmem:[#allocation2 + $0x20] sm:$0xff]
  %v356 = vld [vmem:[#allocation2 + $0x28] sm:$0xff]
  %v357 = vld [vmem:[#allocation2 + $0x30] sm:$0xff]
  %v358 = vld [vmem:[#allocation2 + $0x38] sm:$0xff]
  %v359 = vld [vmem:[#allocation2 + $0x40] sm:$0xff]
  %v360 = vld [vmem:[#allocation2 + $0x48] sm:$0xff]
  %v361 = vld [vmem:[#allocation2 + $0x50] sm:$0xff]
  %v362 = vld [vmem:[#allocation2 + $0x58] sm:$0xff]
  %v363 = vld [vmem:[#allocation2 + $0x60] sm:$0xff]
  %v364 = vld [vmem:[#allocation2 + $0x68] sm:$0xff]
  %v365 = vld [vmem:[#allocation2 + $0x70] sm:$0xff]
  %v366 = vld [vmem:[#allocation2 + $0x78] sm:$0xff]
  %v367 = vsel %vm329, %v244, inf
  %v368 = vsel %vm330, %v245, inf
  %v369 = vsel %vm331, %v246, inf
  %v370 = vsel %vm332, %v247, inf
  %v371 = vsel %vm333, %v248, inf
  %v372 = vsel %vm334, %v249, inf
  %v373 = vsel %vm335, %v250, inf
  %v374 = vsel %vm336, %v251, inf
  %v375 = vsel %vm337, %v252, inf
  %v376 = vsel %vm338, %v253, inf
  %v377 = vsel %vm339, %v254, inf
  %v378 = vsel %vm340, %v255, inf
  %v379 = vsel %vm341, %v256, inf
  %v380 = vsel %vm342, %v257, inf
  %v381 = vsel %vm343, %v258, inf
  %v382 = vsel %vm344, %v259, inf
  %383 = vmin.xlane.f32.xlu0 %v367
  %v384 = vpop.xlane.xlu0 %383
  %385 = vmin.xlane.f32.xlu0 %v368
  %v386 = vpop.xlane.xlu0 %385
  %387 = vmin.xlane.f32.xlu0 %v369
  %v388 = vpop.xlane.xlu0 %387
  %389 = vmin.xlane.f32.xlu0 %v370
  %v390 = vpop.xlane.xlu0 %389
  %391 = vmin.xlane.f32.xlu0 %v371
  %v392 = vpop.xlane.xlu0 %391
  %393 = vmin.xlane.f32.xlu0 %v372
  %v394 = vpop.xlane.xlu0 %393
  %395 = vmin.xlane.f32.xlu0 %v373
  %v396 = vpop.xlane.xlu0 %395
  %397 = vmin.xlane.f32.xlu0 %v374
  %v398 = vpop.xlane.xlu0 %397
  %399 = vmin.xlane.f32.xlu0 %v375
  %v400 = vpop.xlane.xlu0 %399
  %401 = vmin.xlane.f32.xlu0 %v376
  %v402 = vpop.xlane.xlu0 %401
  %403 = vmin.xlane.f32.xlu0 %v377
  %v404 = vpop.xlane.xlu0 %403
  %405 = vmin.xlane.f32.xlu0 %v378
  %v406 = vpop.xlane.xlu0 %405
  %407 = vmin.xlane.f32.xlu0 %v379
  %v408 = vpop.xlane.xlu0 %407
  %409 = vmin.xlane.f32.xlu0 %v380
  %v410 = vpop.xlane.xlu0 %409
  %411 = vmin.xlane.f32.xlu0 %v381
  %v412 = vpop.xlane.xlu0 %411
  %413 = vmin.xlane.f32.xlu0 %v382
  %v414 = vpop.xlane.xlu0 %413
  %v415 = vmin.f32 %v351, %v384
  %v416 = vmin.f32 %v352, %v386
  %v417 = vmin.f32 %v353, %v388
  %v418 = vmin.f32 %v354, %v390
  %v419 = vmin.f32 %v355, %v392
  %v420 = vmin.f32 %v356, %v394
  %v421 = vmin.f32 %v357, %v396
  %v422 = vmin.f32 %v358, %v398
  %v423 = vmin.f32 %v359, %v400
  %v424 = vmin.f32 %v360, %v402
  %v425 = vmin.f32 %v361, %v404
  %v426 = vmin.f32 %v362, %v406
  %v427 = vmin.f32 %v363, %v408
  %v428 = vmin.f32 %v364, %v410
  %v429 = vmin.f32 %v365, %v412
  %v430 = vmin.f32 %v366, %v414
  %vm431 = vcmask 7168
  %432 = vst.msk [vmem:[#allocation2] sm:$0xff] %vm431, %v415
  %433 = vst.msk [vmem:[#allocation2 + $0x8] sm:$0xff] %vm431, %v416
  %434 = vst.msk [vmem:[#allocation2 + $0x10] sm:$0xff] %vm431, %v417
  %435 = vst.msk [vmem:[#allocation2 + $0x18] sm:$0xff] %vm431, %v418
  %436 = vst.msk [vmem:[#allocation2 + $0x20] sm:$0xff] %vm431, %v419
  %437 = vst.msk [vmem:[#allocation2 + $0x28] sm:$0xff] %vm431, %v420
  %438 = vst.msk [vmem:[#allocation2 + $0x30] sm:$0xff] %vm431, %v421
  %439 = vst.msk [vmem:[#allocation2 + $0x38] sm:$0xff] %vm431, %v422
  %440 = vst.msk [vmem:[#allocation2 + $0x40] sm:$0xff] %vm431, %v423
  %441 = vst.msk [vmem:[#allocation2 + $0x48] sm:$0xff] %vm431, %v424
  %442 = vst.msk [vmem:[#allocation2 + $0x50] sm:$0xff] %vm431, %v425
  %443 = vst.msk [vmem:[#allocation2 + $0x58] sm:$0xff] %vm431, %v426
  %444 = vst.msk [vmem:[#allocation2 + $0x60] sm:$0xff] %vm431, %v427
  %445 = vst.msk [vmem:[#allocation2 + $0x68] sm:$0xff] %vm431, %v428
  %446 = vst.msk [vmem:[#allocation2 + $0x70] sm:$0xff] %vm431, %v429
  %447 = vst.msk [vmem:[#allocation2 + $0x78] sm:$0xff] %vm431, %v430
  %v448 = vld [vmem:[#allocation3] sm:$0xff]
  %v449 = vld [vmem:[#allocation3 + $0x8] sm:$0xff]
  %v450 = vld [vmem:[#allocation3 + $0x10] sm:$0xff]
  %v451 = vld [vmem:[#allocation3 + $0x18] sm:$0xff]
  %v452 = vld [vmem:[#allocation3 + $0x20] sm:$0xff]
  %v453 = vld [vmem:[#allocation3 + $0x28] sm:$0xff]
  %v454 = vld [vmem:[#allocation3 + $0x30] sm:$0xff]
  %v455 = vld [vmem:[#allocation3 + $0x38] sm:$0xff]
  %v456 = vld [vmem:[#allocation3 + $0x40] sm:$0xff]
  %v457 = vld [vmem:[#allocation3 + $0x48] sm:$0xff]
  %v458 = vld [vmem:[#allocation3 + $0x50] sm:$0xff]
  %v459 = vld [vmem:[#allocation3 + $0x58] sm:$0xff]
  %v460 = vld [vmem:[#allocation3 + $0x60] sm:$0xff]
  %v461 = vld [vmem:[#allocation3 + $0x68] sm:$0xff]
  %v462 = vld [vmem:[#allocation3 + $0x70] sm:$0xff]
  %v463 = vld [vmem:[#allocation3 + $0x78] sm:$0xff]
  %v464 = vsel %vm350, 1, 0
  %vm465 = vcmp.eq.s32.totalorder %v464, 1
  %vm466 = vmor %vm329, %vm465
  %vm467 = vmor %vm330, %vm465
  %vm468 = vmor %vm331, %vm465
  %vm469 = vmor %vm332, %vm465
  %vm470 = vmor %vm333, %vm465
  %vm471 = vmor %vm334, %vm465
  %vm472 = vmor %vm335, %vm465
  %vm473 = vmor %vm336, %vm465
  %vm474 = vmor %vm337, %vm465
  %vm475 = vmor %vm338, %vm465
  %vm476 = vmor %vm339, %vm465
  %vm477 = vmor %vm340, %vm465
  %vm478 = vmor %vm341, %vm465
  %vm479 = vmor %vm342, %vm465
  %vm480 = vmor %vm343, %vm465
  %vm481 = vmor %vm344, %vm465
  %v482 = vsel %vm466, -inf, %v244
  %v483 = vsel %vm467, -inf, %v245
  %v484 = vsel %vm468, -inf, %v246
  %v485 = vsel %vm469, -inf, %v247
  %v486 = vsel %vm470, -inf, %v248
  %v487 = vsel %vm471, -inf, %v249
  %v488 = vsel %vm472, -inf, %v250
  %v489 = vsel %vm473, -inf, %v251
  %v490 = vsel %vm474, -inf, %v252
  %v491 = vsel %vm475, -inf, %v253
  %v492 = vsel %vm476, -inf, %v254
  %v493 = vsel %vm477, -inf, %v255
  %v494 = vsel %vm478, -inf, %v256
  %v495 = vsel %vm479, -inf, %v257
  %v496 = vsel %vm480, -inf, %v258
  %v497 = vsel %vm481, -inf, %v259
  %498 = vmax.xlane.f32.xlu0 %v482
  %v499 = vpop.xlane.xlu0 %498
  %500 = vmax.xlane.f32.xlu0 %v483
  %v501 = vpop.xlane.xlu0 %500
  %502 = vmax.xlane.f32.xlu0 %v484
  %v503 = vpop.xlane.xlu0 %502
  %504 = vmax.xlane.f32.xlu0 %v485
  %v505 = vpop.xlane.xlu0 %504
  %506 = vmax.xlane.f32.xlu0 %v486
  %v507 = vpop.xlane.xlu0 %506
  %508 = vmax.xlane.f32.xlu0 %v487
  %v509 = vpop.xlane.xlu0 %508
  %510 = vmax.xlane.f32.xlu0 %v488
  %v511 = vpop.xlane.xlu0 %510
  %512 = vmax.xlane.f32.xlu0 %v489
  %v513 = vpop.xlane.xlu0 %512
  %514 = vmax.xlane.f32.xlu0 %v490
  %v515 = vpop.xlane.xlu0 %514
  %516 = vmax.xlane.f32.xlu0 %v491
  %v517 = vpop.xlane.xlu0 %516
  %518 = vmax.xlane.f32.xlu0 %v492
  %v519 = vpop.xlane.xlu0 %518
  %520 = vmax.xlane.f32.xlu0 %v493
  %v521 = vpop.xlane.xlu0 %520
  %522 = vmax.xlane.f32.xlu0 %v494
  %v523 = vpop.xlane.xlu0 %522
  %524 = vmax.xlane.f32.xlu0 %v495
  %v525 = vpop.xlane.xlu0 %524
  %526 = vmax.xlane.f32.xlu0 %v496
  %v527 = vpop.xlane.xlu0 %526
  %528 = vmax.xlane.f32.xlu0 %v497
  %v529 = vpop.xlane.xlu0 %528
  %v530 = vmax.f32 %v448, %v499
  %v531 = vmax.f32 %v449, %v501
  %v532 = vmax.f32 %v450, %v503
  %v533 = vmax.f32 %v451, %v505
  %v534 = vmax.f32 %v452, %v507
  %v535 = vmax.f32 %v453, %v509
  %v536 = vmax.f32 %v454, %v511
  %v537 = vmax.f32 %v455, %v513
  %v538 = vmax.f32 %v456, %v515
  %v539 = vmax.f32 %v457, %v517
  %v540 = vmax.f32 %v458, %v519
  %v541 = vmax.f32 %v459, %v521
  %v542 = vmax.f32 %v460, %v523
  %v543 = vmax.f32 %v461, %v525
  %v544 = vmax.f32 %v462, %v527
  %v545 = vmax.f32 %v463, %v529
  %546 = vst.msk [vmem:[#allocation3] sm:$0xff] %vm431, %v530
  %547 = vst.msk [vmem:[#allocation3 + $0x8] sm:$0xff] %vm431, %v531
  %548 = vst.msk [vmem:[#allocation3 + $0x10] sm:$0xff] %vm431, %v532
  %549 = vst.msk [vmem:[#allocation3 + $0x18] sm:$0xff] %vm431, %v533
  %550 = vst.msk [vmem:[#allocation3 + $0x20] sm:$0xff] %vm431, %v534
  %551 = vst.msk [vmem:[#allocation3 + $0x28] sm:$0xff] %vm431, %v535
  %552 = vst.msk [vmem:[#allocation3 + $0x30] sm:$0xff] %vm431, %v536
  %553 = vst.msk [vmem:[#allocation3 + $0x38] sm:$0xff] %vm431, %v537
  %554 = vst.msk [vmem:[#allocation3 + $0x40] sm:$0xff] %vm431, %v538
  %555 = vst.msk [vmem:[#allocation3 + $0x48] sm:$0xff] %vm431, %v539
  %556 = vst.msk [vmem:[#allocation3 + $0x50] sm:$0xff] %vm431, %v540
  %557 = vst.msk [vmem:[#allocation3 + $0x58] sm:$0xff] %vm431, %v541
  %558 = vst.msk [vmem:[#allocation3 + $0x60] sm:$0xff] %vm431, %v542
  %559 = vst.msk [vmem:[#allocation3 + $0x68] sm:$0xff] %vm431, %v543
  %560 = vst.msk [vmem:[#allocation3 + $0x70] sm:$0xff] %vm431, %v544
  %561 = vst.msk [vmem:[#allocation3 + $0x78] sm:$0xff] %vm431, %v545
  // Predicated region
  $region30: #{tpu_custom_call.1} parent=0 // pred_check
    %p562 = pneg %p23
  $region31: #{tpu_custom_call.1} parent=0 // pred_check_branch
    %564 = sbr.rel (%p562) target = $region33
  $region32: #{tpu_custom_call.1} parent=0 // pred_region
    %v565 = vld [vmem:[%s2] sm:$0xff]
    %v566 = vld [vmem:[%s2 + $0x8] sm:$0xff]
    %v567 = vld [vmem:[%s2 + $0x10] sm:$0xff]
    %v568 = vld [vmem:[%s2 + $0x18] sm:$0xff]
    %v569 = vld [vmem:[%s2 + $0x20] sm:$0xff]
    %v570 = vld [vmem:[%s2 + $0x28] sm:$0xff]
    %v571 = vld [vmem:[%s2 + $0x30] sm:$0xff]
    %v572 = vld [vmem:[%s2 + $0x38] sm:$0xff]
    %v573 = vld [vmem:[%s2 + $0x40] sm:$0xff]
    %v574 = vld [vmem:[%s2 + $0x48] sm:$0xff]
    %v575 = vld [vmem:[%s2 + $0x50] sm:$0xff]
    %v576 = vld [vmem:[%s2 + $0x58] sm:$0xff]
    %v577 = vld [vmem:[%s2 + $0x60] sm:$0xff]
    %v578 = vld [vmem:[%s2 + $0x68] sm:$0xff]
    %v579 = vld [vmem:[%s2 + $0x70] sm:$0xff]
    %v580 = vld [vmem:[%s2 + $0x78] sm:$0xff]
    %v581 = vld [vmem:[#allocation2] sm:$0xff]
    %v582 = vld [vmem:[#allocation2 + $0x8] sm:$0xff]
    %v583 = vld [vmem:[#allocation2 + $0x10] sm:$0xff]
    %v584 = vld [vmem:[#allocation2 + $0x18] sm:$0xff]
    %v585 = vld [vmem:[#allocation2 + $0x20] sm:$0xff]
    %v586 = vld [vmem:[#allocation2 + $0x28] sm:$0xff]
    %v587 = vld [vmem:[#allocation2 + $0x30] sm:$0xff]
    %v588 = vld [vmem:[#allocation2 + $0x38] sm:$0xff]
    %v589 = vld [vmem:[#allocation2 + $0x40] sm:$0xff]
    %v590 = vld [vmem:[#allocation2 + $0x48] sm:$0xff]
    %v591 = vld [vmem:[#allocation2 + $0x50] sm:$0xff]
    %v592 = vld [vmem:[#allocation2 + $0x58] sm:$0xff]
    %v593 = vld [vmem:[#allocation2 + $0x60] sm:$0xff]
    %v594 = vld [vmem:[#allocation2 + $0x68] sm:$0xff]
    %v595 = vld [vmem:[#allocation2 + $0x70] sm:$0xff]
    %v596 = vld [vmem:[#allocation2 + $0x78] sm:$0xff]
    %v597 = vmul.f32 %v581, 2.0
    %v598 = vmul.f32 %v582, 2.0
    %v599 = vmul.f32 %v583, 2.0
    %v600 = vmul.f32 %v584, 2.0
    %v601 = vmul.f32 %v585, 2.0
    %v602 = vmul.f32 %v586, 2.0
    %v603 = vmul.f32 %v587, 2.0
    %v604 = vmul.f32 %v588, 2.0
    %v605 = vmul.f32 %v589, 2.0
    %v606 = vmul.f32 %v590, 2.0
    %v607 = vmul.f32 %v591, 2.0
    %v608 = vmul.f32 %v592, 2.0
    %v609 = vmul.f32 %v593, 2.0
    %v610 = vmul.f32 %v594, 2.0
    %v611 = vmul.f32 %v595, 2.0
    %v612 = vmul.f32 %v596, 2.0
    %v613 = vsub.f32 %v565, %v597
    %v614 = vsub.f32 %v566, %v598
    %v615 = vsub.f32 %v567, %v599
    %v616 = vsub.f32 %v568, %v600
    %v617 = vsub.f32 %v569, %v601
    %v618 = vsub.f32 %v570, %v602
    %v619 = vsub.f32 %v571, %v603
    %v620 = vsub.f32 %v572, %v604
    %v621 = vsub.f32 %v573, %v605
    %v622 = vsub.f32 %v574, %v606
    %v623 = vsub.f32 %v575, %v607
    %v624 = vsub.f32 %v576, %v608
    %v625 = vsub.f32 %v577, %v609
    %v626 = vsub.f32 %v578, %v610
    %v627 = vsub.f32 %v579, %v611
    %v628 = vsub.f32 %v580, %v612
    %v629 = vmax.f32 %v613, 1e-12
    %v630 = vmax.f32 %v614, 1e-12
    %v631 = vmax.f32 %v615, 1e-12
    %v632 = vmax.f32 %v616, 1e-12
    %v633 = vmax.f32 %v617, 1e-12
    %v634 = vmax.f32 %v618, 1e-12
    %v635 = vmax.f32 %v619, 1e-12
    %v636 = vmax.f32 %v620, 1e-12
    %v637 = vmax.f32 %v621, 1e-12
    %v638 = vmax.f32 %v622, 1e-12
    %v639 = vmax.f32 %v623, 1e-12
    %v640 = vmax.f32 %v624, 1e-12
    %v641 = vmax.f32 %v625, 1e-12
    %v642 = vmax.f32 %v626, 1e-12
    %v643 = vmax.f32 %v627, 1e-12
    %v644 = vmax.f32 %v628, 1e-12
    %v645 = vrsqrt.pop %v629
    %v646 = vmul.f32 %v629, %v645
    %vm647 = vcmp.eq.f32.partialorder %v629, inf
    %v648 = vsel %vm647, %v629, %v646
    %vm649 = vcmp.eq.f32.partialorder %v629, 0.0
    %v650 = vand.u32 %v629, 2147483648
    %v651 = vsel %vm649, %v650, %v648
    %v652 = vrsqrt.pop %v630
    %v653 = vmul.f32 %v630, %v652
    %vm654 = vcmp.eq.f32.partialorder %v630, inf
    %v655 = vsel %vm654, %v630, %v653
    %vm656 = vcmp.eq.f32.partialorder %v630, 0.0
    %v657 = vand.u32 %v630, 2147483648
    %v658 = vsel %vm656, %v657, %v655
    %v659 = vrsqrt.pop %v631
    %v660 = vmul.f32 %v631, %v659
    %vm661 = vcmp.eq.f32.partialorder %v631, inf
    %v662 = vsel %vm661, %v631, %v660
    %vm663 = vcmp.eq.f32.partialorder %v631, 0.0
    %v664 = vand.u32 %v631, 2147483648
    %v665 = vsel %vm663, %v664, %v662
    %v666 = vrsqrt.pop %v632
    %v667 = vmul.f32 %v632, %v666
    %vm668 = vcmp.eq.f32.partialorder %v632, inf
    %v669 = vsel %vm668, %v632, %v667
    %vm670 = vcmp.eq.f32.partialorder %v632, 0.0
    %v671 = vand.u32 %v632, 2147483648
    %v672 = vsel %vm670, %v671, %v669
    %v673 = vrsqrt.pop %v633
    %v674 = vmul.f32 %v633, %v673
    %vm675 = vcmp.eq.f32.partialorder %v633, inf
    %v676 = vsel %vm675, %v633, %v674
    %vm677 = vcmp.eq.f32.partialorder %v633, 0.0
    %v678 = vand.u32 %v633, 2147483648
    %v679 = vsel %vm677, %v678, %v676
    %v680 = vrsqrt.pop %v634
    %v681 = vmul.f32 %v634, %v680
    %vm682 = vcmp.eq.f32.partialorder %v634, inf
    %v683 = vsel %vm682, %v634, %v681
    %vm684 = vcmp.eq.f32.partialorder %v634, 0.0
    %v685 = vand.u32 %v634, 2147483648
    %v686 = vsel %vm684, %v685, %v683
    %v687 = vrsqrt.pop %v635
    %v688 = vmul.f32 %v635, %v687
    %vm689 = vcmp.eq.f32.partialorder %v635, inf
    %v690 = vsel %vm689, %v635, %v688
    %vm691 = vcmp.eq.f32.partialorder %v635, 0.0
    %v692 = vand.u32 %v635, 2147483648
    %v693 = vsel %vm691, %v692, %v690
    %v694 = vrsqrt.pop %v636
    %v695 = vmul.f32 %v636, %v694
    %vm696 = vcmp.eq.f32.partialorder %v636, inf
    %v697 = vsel %vm696, %v636, %v695
    %vm698 = vcmp.eq.f32.partialorder %v636, 0.0
    %v699 = vand.u32 %v636, 2147483648
    %v700 = vsel %vm698, %v699, %v697
    %v701 = vrsqrt.pop %v637
    %v702 = vmul.f32 %v637, %v701
    %vm703 = vcmp.eq.f32.partialorder %v637, inf
    %v704 = vsel %vm703, %v637, %v702
    %vm705 = vcmp.eq.f32.partialorder %v637, 0.0
    %v706 = vand.u32 %v637, 2147483648
    %v707 = vsel %vm705, %v706, %v704
    %v708 = vrsqrt.pop %v638
    %v709 = vmul.f32 %v638, %v708
    %vm710 = vcmp.eq.f32.partialorder %v638, inf
    %v711 = vsel %vm710, %v638, %v709
    %vm712 = vcmp.eq.f32.partialorder %v638, 0.0
    %v713 = vand.u32 %v638, 2147483648
    %v714 = vsel %vm712, %v713, %v711
    %v715 = vrsqrt.pop %v639
    %v716 = vmul.f32 %v639, %v715
    %vm717 = vcmp.eq.f32.partialorder %v639, inf
    %v718 = vsel %vm717, %v639, %v716
    %vm719 = vcmp.eq.f32.partialorder %v639, 0.0
    %v720 = vand.u32 %v639, 2147483648
    %v721 = vsel %vm719, %v720, %v718
    %v722 = vrsqrt.pop %v640
    %v723 = vmul.f32 %v640, %v722
    %vm724 = vcmp.eq.f32.partialorder %v640, inf
    %v725 = vsel %vm724, %v640, %v723
    %vm726 = vcmp.eq.f32.partialorder %v640, 0.0
    %v727 = vand.u32 %v640, 2147483648
    %v728 = vsel %vm726, %v727, %v725
    %v729 = vrsqrt.pop %v641
    %v730 = vmul.f32 %v641, %v729
    %vm731 = vcmp.eq.f32.partialorder %v641, inf
    %v732 = vsel %vm731, %v641, %v730
    %vm733 = vcmp.eq.f32.partialorder %v641, 0.0
    %v734 = vand.u32 %v641, 2147483648
    %v735 = vsel %vm733, %v734, %v732
    %v736 = vrsqrt.pop %v642
    %v737 = vmul.f32 %v642, %v736
    %vm738 = vcmp.eq.f32.partialorder %v642, inf
    %v739 = vsel %vm738, %v642, %v737
    %vm740 = vcmp.eq.f32.partialorder %v642, 0.0
    %v741 = vand.u32 %v642, 2147483648
    %v742 = vsel %vm740, %v741, %v739
    %v743 = vrsqrt.pop %v643
    %v744 = vmul.f32 %v643, %v743
    %vm745 = vcmp.eq.f32.partialorder %v643, inf
    %v746 = vsel %vm745, %v643, %v744
    %vm747 = vcmp.eq.f32.partialorder %v643, 0.0
    %v748 = vand.u32 %v643, 2147483648
    %v749 = vsel %vm747, %v748, %v746
    %v750 = vrsqrt.pop %v644
    %v751 = vmul.f32 %v644, %v750
    %vm752 = vcmp.eq.f32.partialorder %v644, inf
    %v753 = vsel %vm752, %v644, %v751
    %vm754 = vcmp.eq.f32.partialorder %v644, 0.0
    %v755 = vand.u32 %v644, 2147483648
    %v756 = vsel %vm754, %v755, %v753
    %v757 = vld [vmem:[#allocation3] sm:$0xff]
    %v758 = vld [vmem:[#allocation3 + $0x8] sm:$0xff]
    %v759 = vld [vmem:[#allocation3 + $0x10] sm:$0xff]
    %v760 = vld [vmem:[#allocation3 + $0x18] sm:$0xff]
    %v761 = vld [vmem:[#allocation3 + $0x20] sm:$0xff]
    %v762 = vld [vmem:[#allocation3 + $0x28] sm:$0xff]
    %v763 = vld [vmem:[#allocation3 + $0x30] sm:$0xff]
    %v764 = vld [vmem:[#allocation3 + $0x38] sm:$0xff]
    %v765 = vld [vmem:[#allocation3 + $0x40] sm:$0xff]
    %v766 = vld [vmem:[#allocation3 + $0x48] sm:$0xff]
    %v767 = vld [vmem:[#allocation3 + $0x50] sm:$0xff]
    %v768 = vld [vmem:[#allocation3 + $0x58] sm:$0xff]
    %v769 = vld [vmem:[#allocation3 + $0x60] sm:$0xff]
    %v770 = vld [vmem:[#allocation3 + $0x68] sm:$0xff]
    %v771 = vld [vmem:[#allocation3 + $0x70] sm:$0xff]
    %v772 = vld [vmem:[#allocation3 + $0x78] sm:$0xff]
    %v773 = vmul.f32 %v757, 2.0
    %v774 = vmul.f32 %v758, 2.0
    %v775 = vmul.f32 %v759, 2.0
    %v776 = vmul.f32 %v760, 2.0
    %v777 = vmul.f32 %v761, 2.0
    %v778 = vmul.f32 %v762, 2.0
    %v779 = vmul.f32 %v763, 2.0
    %v780 = vmul.f32 %v764, 2.0
    %v781 = vmul.f32 %v765, 2.0
    %v782 = vmul.f32 %v766, 2.0
    %v783 = vmul.f32 %v767, 2.0
    %v784 = vmul.f32 %v768, 2.0
    %v785 = vmul.f32 %v769, 2.0
    %v786 = vmul.f32 %v770, 2.0
    %v787 = vmul.f32 %v771, 2.0
    %v788 = vmul.f32 %v772, 2.0
    %v789 = vsub.f32 %v565, %v773
    %v790 = vsub.f32 %v566, %v774
    %v791 = vsub.f32 %v567, %v775
    %v792 = vsub.f32 %v568, %v776
    %v793 = vsub.f32 %v569, %v777
    %v794 = vsub.f32 %v570, %v778
    %v795 = vsub.f32 %v571, %v779
    %v796 = vsub.f32 %v572, %v780
    %v797 = vsub.f32 %v573, %v781
    %v798 = vsub.f32 %v574, %v782
    %v799 = vsub.f32 %v575, %v783
    %v800 = vsub.f32 %v576, %v784
    %v801 = vsub.f32 %v577, %v785
    %v802 = vsub.f32 %v578, %v786
    %v803 = vsub.f32 %v579, %v787
    %v804 = vsub.f32 %v580, %v788
    %v805 = vmax.f32 %v789, 1e-12
    %v806 = vmax.f32 %v790, 1e-12
    %v807 = vmax.f32 %v791, 1e-12
    %v808 = vmax.f32 %v792, 1e-12
    %v809 = vmax.f32 %v793, 1e-12
    %v810 = vmax.f32 %v794, 1e-12
    %v811 = vmax.f32 %v795, 1e-12
    %v812 = vmax.f32 %v796, 1e-12
    %v813 = vmax.f32 %v797, 1e-12
    %v814 = vmax.f32 %v798, 1e-12
    %v815 = vmax.f32 %v799, 1e-12
    %v816 = vmax.f32 %v800, 1e-12
    %v817 = vmax.f32 %v801, 1e-12
    %v818 = vmax.f32 %v802, 1e-12
    %v819 = vmax.f32 %v803, 1e-12
    %v820 = vmax.f32 %v804, 1e-12
    %v821 = vrsqrt.pop %v805
    %v822 = vmul.f32 %v805, %v821
    %vm823 = vcmp.eq.f32.partialorder %v805, inf
    %v824 = vsel %vm823, %v805, %v822
    %vm825 = vcmp.eq.f32.partialorder %v805, 0.0
    %v826 = vand.u32 %v805, 2147483648
    %v827 = vsel %vm825, %v826, %v824
    %v828 = vrsqrt.pop %v806
    %v829 = vmul.f32 %v806, %v828
    %vm830 = vcmp.eq.f32.partialorder %v806, inf
    %v831 = vsel %vm830, %v806, %v829
    %vm832 = vcmp.eq.f32.partialorder %v806, 0.0
    %v833 = vand.u32 %v806, 2147483648
    %v834 = vsel %vm832, %v833, %v831
    %v835 = vrsqrt.pop %v807
    %v836 = vmul.f32 %v807, %v835
    %vm837 = vcmp.eq.f32.partialorder %v807, inf
    %v838 = vsel %vm837, %v807, %v836
    %vm839 = vcmp.eq.f32.partialorder %v807, 0.0
    %v840 = vand.u32 %v807, 2147483648
    %v841 = vsel %vm839, %v840, %v838
    %v842 = vrsqrt.pop %v808
    %v843 = vmul.f32 %v808, %v842
    %vm844 = vcmp.eq.f32.partialorder %v808, inf
    %v845 = vsel %vm844, %v808, %v843
    %vm846 = vcmp.eq.f32.partialorder %v808, 0.0
    %v847 = vand.u32 %v808, 2147483648
    %v848 = vsel %vm846, %v847, %v845
    %v849 = vrsqrt.pop %v809
    %v850 = vmul.f32 %v809, %v849
    %vm851 = vcmp.eq.f32.partialorder %v809, inf
    %v852 = vsel %vm851, %v809, %v850
    %vm853 = vcmp.eq.f32.partialorder %v809, 0.0
    %v854 = vand.u32 %v809, 2147483648
    %v855 = vsel %vm853, %v854, %v852
    %v856 = vrsqrt.pop %v810
    %v857 = vmul.f32 %v810, %v856
    %vm858 = vcmp.eq.f32.partialorder %v810, inf
    %v859 = vsel %vm858, %v810, %v857
    %vm860 = vcmp.eq.f32.partialorder %v810, 0.0
    %v861 = vand.u32 %v810, 2147483648
    %v862 = vsel %vm860, %v861, %v859
    %v863 = vrsqrt.pop %v811
    %v864 = vmul.f32 %v811, %v863
    %vm865 = vcmp.eq.f32.partialorder %v811, inf
    %v866 = vsel %vm865, %v811, %v864
    %vm867 = vcmp.eq.f32.partialorder %v811, 0.0
    %v868 = vand.u32 %v811, 2147483648
    %v869 = vsel %vm867, %v868, %v866
    %v870 = vrsqrt.pop %v812
    %v871 = vmul.f32 %v812, %v870
    %vm872 = vcmp.eq.f32.partialorder %v812, inf
    %v873 = vsel %vm872, %v812, %v871
    %vm874 = vcmp.eq.f32.partialorder %v812, 0.0
    %v875 = vand.u32 %v812, 2147483648
    %v876 = vsel %vm874, %v875, %v873
    %v877 = vrsqrt.pop %v813
    %v878 = vmul.f32 %v813, %v877
    %vm879 = vcmp.eq.f32.partialorder %v813, inf
    %v880 = vsel %vm879, %v813, %v878
    %vm881 = vcmp.eq.f32.partialorder %v813, 0.0
    %v882 = vand.u32 %v813, 2147483648
    %v883 = vsel %vm881, %v882, %v880
    %v884 = vrsqrt.pop %v814
    %v885 = vmul.f32 %v814, %v884
    %vm886 = vcmp.eq.f32.partialorder %v814, inf
    %v887 = vsel %vm886, %v814, %v885
    %vm888 = vcmp.eq.f32.partialorder %v814, 0.0
    %v889 = vand.u32 %v814, 2147483648
    %v890 = vsel %vm888, %v889, %v887
    %v891 = vrsqrt.pop %v815
    %v892 = vmul.f32 %v815, %v891
    %vm893 = vcmp.eq.f32.partialorder %v815, inf
    %v894 = vsel %vm893, %v815, %v892
    %vm895 = vcmp.eq.f32.partialorder %v815, 0.0
    %v896 = vand.u32 %v815, 2147483648
    %v897 = vsel %vm895, %v896, %v894
    %v898 = vrsqrt.pop %v816
    %v899 = vmul.f32 %v816, %v898
    %vm900 = vcmp.eq.f32.partialorder %v816, inf
    %v901 = vsel %vm900, %v816, %v899
    %vm902 = vcmp.eq.f32.partialorder %v816, 0.0
    %v903 = vand.u32 %v816, 2147483648
    %v904 = vsel %vm902, %v903, %v901
    %v905 = vrsqrt.pop %v817
    %v906 = vmul.f32 %v817, %v905
    %vm907 = vcmp.eq.f32.partialorder %v817, inf
    %v908 = vsel %vm907, %v817, %v906
    %vm909 = vcmp.eq.f32.partialorder %v817, 0.0
    %v910 = vand.u32 %v817, 2147483648
    %v911 = vsel %vm909, %v910, %v908
    %v912 = vrsqrt.pop %v818
    %v913 = vmul.f32 %v818, %v912
    %vm914 = vcmp.eq.f32.partialorder %v818, inf
    %v915 = vsel %vm914, %v818, %v913
    %vm916 = vcmp.eq.f32.partialorder %v818, 0.0
    %v917 = vand.u32 %v818, 2147483648
    %v918 = vsel %vm916, %v917, %v915
    %v919 = vrsqrt.pop %v819
    %v920 = vmul.f32 %v819, %v919
    %vm921 = vcmp.eq.f32.partialorder %v819, inf
    %v922 = vsel %vm921, %v819, %v920
    %vm923 = vcmp.eq.f32.partialorder %v819, 0.0
    %v924 = vand.u32 %v819, 2147483648
    %v925 = vsel %vm923, %v924, %v922
    %v926 = vrsqrt.pop %v820
    %v927 = vmul.f32 %v820, %v926
    %vm928 = vcmp.eq.f32.partialorder %v820, inf
    %v929 = vsel %vm928, %v820, %v927
    %vm930 = vcmp.eq.f32.partialorder %v820, 0.0
    %v931 = vand.u32 %v820, 2147483648
    %v932 = vsel %vm930, %v931, %v929
    %s933 = smul.u32 0, 128
    %v934 = vlaneseq
    %v935 = vshrl.u32 %v934, 7
    %v936 = vadd.s32 %v935, 8
    %v937 = vadd.s32 %v935, 16
    %v938 = vadd.s32 %v935, 24
    %v939 = vadd.s32 %v935, 32
    %v940 = vadd.s32 %v935, 40
    %v941 = vadd.s32 %v935, 48
    %v942 = vadd.s32 %v935, 56
    %v943 = vadd.s32 %v935, 64
    %v944 = vadd.s32 %v935, 72
    %v945 = vadd.s32 %v935, 80
    %v946 = vadd.s32 %v935, 88
    %v947 = vadd.s32 %v935, 96
    %v948 = vadd.s32 %v935, 104
    %v949 = vadd.s32 %v935, 112
    %v950 = vadd.s32 %v935, 120
    %v951 = vstv %s933
    %v952 = vadd.s32 %v951, %v935
    %v953 = vadd.s32 %v951, %v936
    %v954 = vadd.s32 %v951, %v937
    %v955 = vadd.s32 %v951, %v938
    %v956 = vadd.s32 %v951, %v939
    %v957 = vadd.s32 %v951, %v940
    %v958 = vadd.s32 %v951, %v941
    %v959 = vadd.s32 %v951, %v942
    %v960 = vadd.s32 %v951, %v943
    %v961 = vadd.s32 %v951, %v944
    %v962 = vadd.s32 %v951, %v945
    %v963 = vadd.s32 %v951, %v946
    %v964 = vadd.s32 %v951, %v947
    %v965 = vadd.s32 %v951, %v948
    %v966 = vadd.s32 %v951, %v949
    %v967 = vadd.s32 %v951, %v950
    %vm968 = vcmp.lt.s32.totalorder %v952, 8
    %vm969 = vcmp.lt.s32.totalorder %v953, 8
    %vm970 = vcmp.lt.s32.totalorder %v954, 8
    %vm971 = vcmp.lt.s32.totalorder %v955, 8
    %vm972 = vcmp.lt.s32.totalorder %v956, 8
    %vm973 = vcmp.lt.s32.totalorder %v957, 8
    %vm974 = vcmp.lt.s32.totalorder %v958, 8
    %vm975 = vcmp.lt.s32.totalorder %v959, 8
    %vm976 = vcmp.lt.s32.totalorder %v960, 8
    %vm977 = vcmp.lt.s32.totalorder %v961, 8
    %vm978 = vcmp.lt.s32.totalorder %v962, 8
    %vm979 = vcmp.lt.s32.totalorder %v963, 8
    %vm980 = vcmp.lt.s32.totalorder %v964, 8
    %vm981 = vcmp.lt.s32.totalorder %v965, 8
    %vm982 = vcmp.lt.s32.totalorder %v966, 8
    %vm983 = vcmp.lt.s32.totalorder %v967, 8
    %v984 = vsel %vm968, 1, 0
    %v985 = vsel %vm969, 1, 0
    %v986 = vsel %vm970, 1, 0
    %v987 = vsel %vm971, 1, 0
    %v988 = vsel %vm972, 1, 0
    %v989 = vsel %vm973, 1, 0
    %v990 = vsel %vm974, 1, 0
    %v991 = vsel %vm975, 1, 0
    %v992 = vsel %vm976, 1, 0
    %v993 = vsel %vm977, 1, 0
    %v994 = vsel %vm978, 1, 0
    %v995 = vsel %vm979, 1, 0
    %v996 = vsel %vm980, 1, 0
    %v997 = vsel %vm981, 1, 0
    %v998 = vsel %vm982, 1, 0
    %v999 = vsel %vm983, 1, 0
    %v1000 = vcvt.s32.f32 %v984
    %v1001 = vcvt.s32.f32 %v985
    %v1002 = vcvt.s32.f32 %v986
    %v1003 = vcvt.s32.f32 %v987
    %v1004 = vcvt.s32.f32 %v988
    %v1005 = vcvt.s32.f32 %v989
    %v1006 = vcvt.s32.f32 %v990
    %v1007 = vcvt.s32.f32 %v991
    %v1008 = vcvt.s32.f32 %v992
    %v1009 = vcvt.s32.f32 %v993
    %v1010 = vcvt.s32.f32 %v994
    %v1011 = vcvt.s32.f32 %v995
    %v1012 = vcvt.s32.f32 %v996
    %v1013 = vcvt.s32.f32 %v997
    %v1014 = vcvt.s32.f32 %v998
    %v1015 = vcvt.s32.f32 %v999
    %v1016 = vsub.f32 %v651, %v827
    %v1017 = vsub.f32 %v658, %v834
    %v1018 = vsub.f32 %v665, %v841
    %v1019 = vsub.f32 %v672, %v848
    %v1020 = vsub.f32 %v679, %v855
    %v1021 = vsub.f32 %v686, %v862
    %v1022 = vsub.f32 %v693, %v869
    %v1023 = vsub.f32 %v700, %v876
    %v1024 = vsub.f32 %v707, %v883
    %v1025 = vsub.f32 %v714, %v890
    %v1026 = vsub.f32 %v721, %v897
    %v1027 = vsub.f32 %v728, %v904
    %v1028 = vsub.f32 %v735, %v911
    %v1029 = vsub.f32 %v742, %v918
    %v1030 = vsub.f32 %v749, %v925
    %v1031 = vsub.f32 %v756, %v932
    %v1032 = vadd.f32 %v1016, 0.3
    %v1033 = vadd.f32 %v1017, 0.3
    %v1034 = vadd.f32 %v1018, 0.3
    %v1035 = vadd.f32 %v1019, 0.3
    %v1036 = vadd.f32 %v1020, 0.3
    %v1037 = vadd.f32 %v1021, 0.3
    %v1038 = vadd.f32 %v1022, 0.3
    %v1039 = vadd.f32 %v1023, 0.3
    %v1040 = vadd.f32 %v1024, 0.3
    %v1041 = vadd.f32 %v1025, 0.3
    %v1042 = vadd.f32 %v1026, 0.3
    %v1043 = vadd.f32 %v1027, 0.3
    %v1044 = vadd.f32 %v1028, 0.3
    %v1045 = vadd.f32 %v1029, 0.3
    %v1046 = vadd.f32 %v1030, 0.3
    %v1047 = vadd.f32 %v1031, 0.3
    %v1048 = vmax.f32 %v1032, 0.0
    %v1049 = vmax.f32 %v1033, 0.0
    %v1050 = vmax.f32 %v1034, 0.0
    %v1051 = vmax.f32 %v1035, 0.0
    %v1052 = vmax.f32 %v1036, 0.0
    %v1053 = vmax.f32 %v1037, 0.0
    %v1054 = vmax.f32 %v1038, 0.0
    %v1055 = vmax.f32 %v1039, 0.0
    %v1056 = vmax.f32 %v1040, 0.0
    %v1057 = vmax.f32 %v1041, 0.0
    %v1058 = vmax.f32 %v1042, 0.0
    %v1059 = vmax.f32 %v1043, 0.0
    %v1060 = vmax.f32 %v1044, 0.0
    %v1061 = vmax.f32 %v1045, 0.0
    %v1062 = vmax.f32 %v1046, 0.0
    %v1063 = vmax.f32 %v1047, 0.0
    %v1064 = vmul.f32 %v1048, %v1000
    %v1065 = vmul.f32 %v1049, %v1001
    %v1066 = vmul.f32 %v1050, %v1002
    %v1067 = vmul.f32 %v1051, %v1003
    %v1068 = vmul.f32 %v1052, %v1004
    %v1069 = vmul.f32 %v1053, %v1005
    %v1070 = vmul.f32 %v1054, %v1006
    %v1071 = vmul.f32 %v1055, %v1007
    %v1072 = vmul.f32 %v1056, %v1008
    %v1073 = vmul.f32 %v1057, %v1009
    %v1074 = vmul.f32 %v1058, %v1010
    %v1075 = vmul.f32 %v1059, %v1011
    %v1076 = vmul.f32 %v1060, %v1012
    %v1077 = vmul.f32 %v1061, %v1013
    %v1078 = vmul.f32 %v1062, %v1014
    %v1079 = vmul.f32 %v1063, %v1015
    %1080 = vst.msk [vmem:[%s6] sm:$0xff] %vm431, %v1064
    %1081 = vst.msk [vmem:[%s6 + $0x8] sm:$0xff] %vm431, %v1065
    %1082 = vst.msk [vmem:[%s6 + $0x10] sm:$0xff] %vm431, %v1066
    %1083 = vst.msk [vmem:[%s6 + $0x18] sm:$0xff] %vm431, %v1067
    %1084 = vst.msk [vmem:[%s6 + $0x20] sm:$0xff] %vm431, %v1068
    %1085 = vst.msk [vmem:[%s6 + $0x28] sm:$0xff] %vm431, %v1069
    %1086 = vst.msk [vmem:[%s6 + $0x30] sm:$0xff] %vm431, %v1070
    %1087 = vst.msk [vmem:[%s6 + $0x38] sm:$0xff] %vm431, %v1071
    %1088 = vst.msk [vmem:[%s6 + $0x40] sm:$0xff] %vm431, %v1072
    %1089 = vst.msk [vmem:[%s6 + $0x48] sm:$0xff] %vm431, %v1073
    %1090 = vst.msk [vmem:[%s6 + $0x50] sm:$0xff] %vm431, %v1074
    %1091 = vst.msk [vmem:[%s6 + $0x58] sm:$0xff] %vm431, %v1075
    %1092 = vst.msk [vmem:[%s6 + $0x60] sm:$0xff] %vm431, %v1076
    %1093 = vst.msk [vmem:[%s6 + $0x68] sm:$0xff] %vm431, %v1077
    %1094 = vst.msk [vmem:[%s6 + $0x70] sm:$0xff] %vm431, %v1078
    %1095 = vst.msk [vmem:[%s6 + $0x78] sm:$0xff] %vm431, %v1079
  $region33: #{tpu_custom_call.1} parent=0 // pred_fallthru
    _
  // Predicated region
  $region34: #{tpu_custom_call.1} parent=0 // pred_check
    _
  $region35: #{tpu_custom_call.1} parent=0 // pred_check_branch
    %1097 = sbr.rel (0) target = $region37
  $region36: #{tpu_custom_call.1} parent=0 // pred_region
    _
  $region37: #{tpu_custom_call.1} parent=0 // pred_fallthru
    _
  // Predicated region
  $region38: #{tpu_custom_call.1} parent=0 // pred_check
    _
  $region39: #{tpu_custom_call.1} parent=0 // pred_check_branch
    %1099 = sbr.rel (0) target = $region41
  $region40: #{tpu_custom_call.1} parent=0 // pred_region
    _
  $region41: #{tpu_custom_call.1} parent=0 // pred_fallthru
    _

</llo_original>
